<compile_context>
chip_gen: v6e
topology: v6e:2x2x1
jax: 0.10.0
libtpu: 0.0.40
codegen_flags: <defaults>
</compile_context>

<pallas_src>
import math

import jax
import jax.numpy as jnp
from jax.experimental import pallas as pl
from jax.experimental.pallas import tpu as pltpu

PI = math.pi

IN_DIM = 2 + 2 + 2 + 2      # 8
HIDDEN = 256
STEPS = 10
OUT_DIM = 2 * STEPS         # 20


def policy_paper_kernel(x_ref, w1_ref, b1_ref, w2_ref, b2_ref,
                        w3_ref, b3_ref, w4_ref, b4_ref,
                        lo_ref, hi_ref, o_ref):
    # Layer 1 (K=8, ~1% of FLOPs): keep f32.
    h = jnp.dot(x_ref[...], w1_ref[...], preferred_element_type=jnp.float32)
    h = jnp.maximum(h + b1_ref[...], 0.0)
    # Layers 2/3 dominate FLOPs: bf16 MXU inputs (weights already bf16),
    # f32 accumulation, bias + ReLU in f32 (v5e VPU has no bf16).
    h = jnp.dot(h.astype(jnp.bfloat16), w2_ref[...],
                preferred_element_type=jnp.float32)
    h = jnp.maximum(h + b2_ref[...], 0.0)
    h = jnp.dot(h.astype(jnp.bfloat16), w3_ref[...],
                preferred_element_type=jnp.float32)
    h = jnp.maximum(h + b3_ref[...], 0.0)
    # Output layer (256 -> 20) is tiny: keep f32 for final precision.
    out = jnp.dot(h, w4_ref[...], preferred_element_type=jnp.float32)
    out = out + b4_ref[...]
    # Per-lane clip with precomputed bound rows:
    # even lanes (u[..., 0]) -> [0, 1], odd lanes (u[..., 1]) -> [-pi, pi].
    o_ref[...] = jnp.clip(out, lo_ref[...], hi_ref[...])


def _round_up(a, b):
    return ((a + b - 1) // b) * b


def policy_paper_forward(x, params):
    """x: (N, 8) f32 -> (N, 10, 2) f32."""
    w1, b1, w2, b2, w3, b3, w4, b4 = params
    n = x.shape[0]

    # Batch tile: multiple of 256 (MXU height on v6e/v7x) for large batches;
    # a single grid step for small batches to avoid per-step overhead.
    if n <= 256:
        tile_n = max(8, _round_up(n, 8))
    else:
        tile_n = 256
    n_pad = _round_up(n, tile_n)
    if n_pad != n:
        x = jnp.pad(x, ((0, n_pad - n), (0, 0)))
    grid = (n_pad // tile_n,)

    # bf16 copies of the dominant weight matrices (half the DMA bytes,
    # ~2x MXU throughput on v6e/v7x); accumulation stays f32 in-kernel.
    w2_bf = w2.astype(jnp.bfloat16)
    w3_bf = w3.astype(jnp.bfloat16)

    # Clip bounds broadcast over the batch tile, built once host-side.
    lo = jnp.tile(jnp.array([0.0, -PI], jnp.float32), STEPS).reshape(1, OUT_DIM)
    hi = jnp.tile(jnp.array([1.0, PI], jnp.float32), STEPS).reshape(1, OUT_DIM)

    def resident(shape):
        # Whole array as one block, same block index for every grid step ->
        # stays resident in VMEM across the batch loop.
        return pl.BlockSpec(shape, lambda i: tuple(0 for _ in shape))

    flat = pl.pallas_call(
        policy_paper_kernel,
        out_shape=jax.ShapeDtypeStruct((n_pad, OUT_DIM), jnp.float32),
        grid_spec=pltpu.PrefetchScalarGridSpec(
            num_scalar_prefetch=0,
            grid=grid,
            in_specs=[
                pl.BlockSpec((tile_n, IN_DIM), lambda i: (i, 0)),
                resident(w1.shape), resident(b1.shape),
                resident(w2_bf.shape), resident(b2.shape),
                resident(w3_bf.shape), resident(b3.shape),
                resident(w4.shape), resident(b4.shape),
                resident(lo.shape), resident(hi.shape),
            ],
            out_specs=pl.BlockSpec((tile_n, OUT_DIM), lambda i: (i, 0)),
        ),
        compiler_params=pltpu.CompilerParams(
            dimension_semantics=("parallel",),
        ),
    )(x, w1, b1, w2_bf, b2, w3_bf, b3, w4, b4, lo, hi)

    return flat[:n].reshape(n, STEPS, 2)


def policy_paper_reference(x, params):
    """Pure-JAX f32 reference matching the PyTorch forward."""
    w1, b1, w2, b2, w3, b3, w4, b4 = params
    h = jnp.maximum(x @ w1 + b1, 0.0)
    h = jnp.maximum(h @ w2 + b2, 0.0)
    h = jnp.maximum(h @ w3 + b3, 0.0)
    u = (h @ w4 + b4).reshape(x.shape[0], STEPS, 2)
    u0 = jnp.clip(u[..., 0], 0.0, 1.0)
    u1 = jnp.clip(u[..., 1], -PI, PI)
    return jnp.stack([u0, u1], axis=-1)


def init_params(key):
    """Deterministic init matching nn.Linear default (uniform +/- 1/sqrt(fan_in))."""
    dims = [IN_DIM, HIDDEN, HIDDEN, HIDDEN, OUT_DIM]
    params = []
    keys = jax.random.split(key, 2 * (len(dims) - 1))
    for i in range(len(dims) - 1):
        fan_in, fan_out = dims[i], dims[i + 1]
        bound = 1.0 / math.sqrt(fan_in)
        w = jax.random.uniform(keys[2 * i], (fan_in, fan_out),
                               minval=-bound, maxval=bound, dtype=jnp.float32)
        b = jax.random.uniform(keys[2 * i + 1], (1, fan_out),
                               minval=-bound, maxval=bound, dtype=jnp.float32)
        params += [w, b]
    return tuple(params)


if __name__ == "__main__":
    batch = 8

    key = jax.random.PRNGKey(0)
    k_params, k_x = jax.random.split(key)
    params = init_params(k_params)
    x = jax.random.normal(k_x, (batch, IN_DIM), dtype=jnp.float32)

    out = policy_paper_forward(x, params)
    out = jax.block_until_ready(out)

    assert out.shape == (batch, STEPS, 2), out.shape
    # Channel bounds enforced by the clip.
    assert float(jnp.min(out[..., 0])) >= 0.0 and float(jnp.max(out[..., 0])) <= 1.0
    assert float(jnp.min(out[..., 1])) >= -PI and float(jnp.max(out[..., 1])) <= PI
    # Numerical check vs. pure-f32 reference (bf16 hidden matmuls -> loose tol).
    ref = policy_paper_reference(x, params)
    max_err = float(jnp.max(jnp.abs(out - ref)))
    assert max_err < 2e-2, f"max abs err {max_err}"

    print("KERNEL_OK")
</pallas_src>

<mosaic_0001>
module attributes {stable_mosaic.version = 11 : i64} {
  func.func @policy_paper_kernel(%arg0: i32, %arg1: memref<8x8xf32, #tpu.memory_space<vmem>>, %arg2: memref<8x256xf32, #tpu.memory_space<vmem>>, %arg3: memref<1x256xf32, #tpu.memory_space<vmem>>, %arg4: memref<256x256xbf16, #tpu.memory_space<vmem>>, %arg5: memref<1x256xf32, #tpu.memory_space<vmem>>, %arg6: memref<256x256xbf16, #tpu.memory_space<vmem>>, %arg7: memref<1x256xf32, #tpu.memory_space<vmem>>, %arg8: memref<256x20xf32, #tpu.memory_space<vmem>>, %arg9: memref<1x20xf32, #tpu.memory_space<vmem>>, %arg10: memref<1x20xf32, #tpu.memory_space<vmem>>, %arg11: memref<1x20xf32, #tpu.memory_space<vmem>>, %arg12: memref<8x20xf32, #tpu.memory_space<vmem>>) attributes {dimension_semantics = [#tpu.dimension_semantics<parallel>], iteration_bounds = array<i64: 1>, scalar_prefetch = 0 : i64, scratch_operands = 0 : i64, tpu.core_type = #tpu.core_type<tc>, window_params = [{transform_indices = @transform_0, window_bounds = array<i64: 8, 8>}, {pipeline_mode = #tpu.pipeline_mode<synchronous>, transform_indices = @transform_1, window_bounds = array<i64: 8, 256>}, {pipeline_mode = #tpu.pipeline_mode<synchronous>, transform_indices = @transform_2, window_bounds = array<i64: 1, 256>}, {pipeline_mode = #tpu.pipeline_mode<synchronous>, transform_indices = @transform_3, window_bounds = array<i64: 256, 256>}, {pipeline_mode = #tpu.pipeline_mode<synchronous>, transform_indices = @transform_4, window_bounds = array<i64: 1, 256>}, {pipeline_mode = #tpu.pipeline_mode<synchronous>, transform_indices = @transform_5, window_bounds = array<i64: 256, 256>}, {pipeline_mode = #tpu.pipeline_mode<synchronous>, transform_indices = @transform_6, window_bounds = array<i64: 1, 256>}, {pipeline_mode = #tpu.pipeline_mode<synchronous>, transform_indices = @transform_7, window_bounds = array<i64: 256, 20>}, {pipeline_mode = #tpu.pipeline_mode<synchronous>, transform_indices = @transform_8, window_bounds = array<i64: 1, 20>}, {pipeline_mode = #tpu.pipeline_mode<synchronous>, transform_indices = @transform_9, window_bounds = array<i64: 1, 20>}, {pipeline_mode = #tpu.pipeline_mode<synchronous>, transform_indices = @transform_10, window_bounds = array<i64: 1, 20>}, {transform_indices = @transform_11, window_bounds = array<i64: 8, 20>}]} {
    %c0 = arith.constant 0 : index
    %c0_0 = arith.constant 0 : index
    %0 = vector.load %arg1[%c0, %c0_0] : memref<8x8xf32, #tpu.memory_space<vmem>>, vector<8x8xf32>
    %c0_1 = arith.constant 0 : index
    %c0_2 = arith.constant 0 : index
    %1 = vector.load %arg2[%c0_1, %c0_2] : memref<8x256xf32, #tpu.memory_space<vmem>>, vector<8x256xf32>
    %cst = arith.constant dense<0.000000e+00> : vector<8x256xf32>
    %2 = tpu.matmul %0, %1, %cst {dimension_numbers = #tpu.dot_dimension_numbers<[1], [0], [0], [1], [0, 0, 1, 1], [], []>} : vector<8x8xf32>, vector<8x256xf32>, vector<8x256xf32> -> vector<8x256xf32>
    %c0_3 = arith.constant 0 : index
    %c0_4 = arith.constant 0 : index
    %3 = vector.load %arg3[%c0_3, %c0_4] : memref<1x256xf32, #tpu.memory_space<vmem>>, vector<1x256xf32>
    %4 = vector.broadcast %3 : vector<1x256xf32> to vector<8x256xf32>
    %5 = arith.addf %2, %4 : vector<8x256xf32>
    %cst_5 = arith.constant 0.000000e+00 : f32
    %6 = vector.broadcast %cst_5 : f32 to vector<8x256xf32>
    %7 = arith.maximumf %5, %6 : vector<8x256xf32>
    %8 = arith.truncf %7 : vector<8x256xf32> to vector<8x256xbf16>
    %c0_6 = arith.constant 0 : index
    %c0_7 = arith.constant 0 : index
    %9 = vector.load %arg4[%c0_6, %c0_7] : memref<256x256xbf16, #tpu.memory_space<vmem>>, vector<256x256xbf16>
    %cst_8 = arith.constant dense<0.000000e+00> : vector<8x256xf32>
    %10 = tpu.matmul %8, %9, %cst_8 {dimension_numbers = #tpu.dot_dimension_numbers<[1], [0], [0], [1], [0, 0, 1, 1], [], []>} : vector<8x256xbf16>, vector<256x256xbf16>, vector<8x256xf32> -> vector<8x256xf32>
    %c0_9 = arith.constant 0 : index
    %c0_10 = arith.constant 0 : index
    %11 = vector.load %arg5[%c0_9, %c0_10] : memref<1x256xf32, #tpu.memory_space<vmem>>, vector<1x256xf32>
    %12 = vector.broadcast %11 : vector<1x256xf32> to vector<8x256xf32>
    %13 = arith.addf %10, %12 : vector<8x256xf32>
    %cst_11 = arith.constant 0.000000e+00 : f32
    %14 = vector.broadcast %cst_11 : f32 to vector<8x256xf32>
    %15 = arith.maximumf %13, %14 : vector<8x256xf32>
    %16 = arith.truncf %15 : vector<8x256xf32> to vector<8x256xbf16>
    %c0_12 = arith.constant 0 : index
    %c0_13 = arith.constant 0 : index
    %17 = vector.load %arg6[%c0_12, %c0_13] : memref<256x256xbf16, #tpu.memory_space<vmem>>, vector<256x256xbf16>
    %cst_14 = arith.constant dense<0.000000e+00> : vector<8x256xf32>
    %18 = tpu.matmul %16, %17, %cst_14 {dimension_numbers = #tpu.dot_dimension_numbers<[1], [0], [0], [1], [0, 0, 1, 1], [], []>} : vector<8x256xbf16>, vector<256x256xbf16>, vector<8x256xf32> -> vector<8x256xf32>
    %c0_15 = arith.constant 0 : index
    %c0_16 = arith.constant 0 : index
    %19 = vector.load %arg7[%c0_15, %c0_16] : memref<1x256xf32, #tpu.memory_space<vmem>>, vector<1x256xf32>
    %20 = vector.broadcast %19 : vector<1x256xf32> to vector<8x256xf32>
    %21 = arith.addf %18, %20 : vector<8x256xf32>
    %cst_17 = arith.constant 0.000000e+00 : f32
    %22 = vector.broadcast %cst_17 : f32 to vector<8x256xf32>
    %23 = arith.maximumf %21, %22 : vector<8x256xf32>
    %c0_18 = arith.constant 0 : index
    %c0_19 = arith.constant 0 : index
    %24 = vector.load %arg8[%c0_18, %c0_19] : memref<256x20xf32, #tpu.memory_space<vmem>>, vector<256x20xf32>
    %cst_20 = arith.constant dense<0.000000e+00> : vector<8x20xf32>
    %25 = tpu.matmul %23, %24, %cst_20 {dimension_numbers = #tpu.dot_dimension_numbers<[1], [0], [0], [1], [0, 0, 1, 1], [], []>} : vector<8x256xf32>, vector<256x20xf32>, vector<8x20xf32> -> vector<8x20xf32>
    %c0_21 = arith.constant 0 : index
    %c0_22 = arith.constant 0 : index
    %26 = vector.load %arg9[%c0_21, %c0_22] : memref<1x20xf32, #tpu.memory_space<vmem>>, vector<1x20xf32>
    %27 = vector.broadcast %26 : vector<1x20xf32> to vector<8x20xf32>
    %28 = arith.addf %25, %27 : vector<8x20xf32>
    %c0_23 = arith.constant 0 : index
    %c0_24 = arith.constant 0 : index
    %29 = vector.load %arg10[%c0_23, %c0_24] : memref<1x20xf32, #tpu.memory_space<vmem>>, vector<1x20xf32>
    %c0_25 = arith.constant 0 : index
    %c0_26 = arith.constant 0 : index
    %30 = vector.load %arg11[%c0_25, %c0_26] : memref<1x20xf32, #tpu.memory_space<vmem>>, vector<1x20xf32>
    %31 = vector.broadcast %29 : vector<1x20xf32> to vector<8x20xf32>
    %32 = arith.maximumf %31, %28 : vector<8x20xf32>
    %33 = vector.broadcast %30 : vector<1x20xf32> to vector<8x20xf32>
    %34 = arith.minimumf %33, %32 : vector<8x20xf32>
    %c0_27 = arith.constant 0 : index
    %c0_28 = arith.constant 0 : index
    %35 = vector.load %arg12[%c0_27, %c0_28] : memref<8x20xf32, #tpu.memory_space<vmem>>, vector<8x20xf32>
    tpu.vector_store %arg12[%c0_27, %c0_28], %34 {strides = array<i32>} : memref<8x20xf32, #tpu.memory_space<vmem>>, vector<8x20xf32>,
    return
  }
  func.func @transform_0(%arg0: i32) -> (i32, i32) {
    %c0_i32 = arith.constant 0 : i32
    %c0_i32_0 = arith.constant 0 : i32
    return %arg0, %c0_i32 : i32, i32
  }
  func.func @transform_1(%arg0: i32) -> (i32, i32) {
    %c0_i32 = arith.constant 0 : i32
    %c0_i32_0 = arith.constant 0 : i32
    %c0_i32_1 = arith.constant 0 : i32
    return %c0_i32, %c0_i32_0 : i32, i32
  }
  func.func @transform_2(%arg0: i32) -> (i32, i32) {
    %c0_i32 = arith.constant 0 : i32
    %c0_i32_0 = arith.constant 0 : i32
    %c0_i32_1 = arith.constant 0 : i32
    return %c0_i32, %c0_i32_0 : i32, i32
  }
  func.func @transform_3(%arg0: i32) -> (i32, i32) {
    %c0_i32 = arith.constant 0 : i32
    %c0_i32_0 = arith.constant 0 : i32
    %c0_i32_1 = arith.constant 0 : i32
    return %c0_i32, %c0_i32_0 : i32, i32
  }
  func.func @transform_4(%arg0: i32) -> (i32, i32) {
    %c0_i32 = arith.constant 0 : i32
    %c0_i32_0 = arith.constant 0 : i32
    %c0_i32_1 = arith.constant 0 : i32
    return %c0_i32, %c0_i32_0 : i32, i32
  }
  func.func @transform_5(%arg0: i32) -> (i32, i32) {
    %c0_i32 = arith.constant 0 : i32
    %c0_i32_0 = arith.constant 0 : i32
    %c0_i32_1 = arith.constant 0 : i32
    return %c0_i32, %c0_i32_0 : i32, i32
  }
  func.func @transform_6(%arg0: i32) -> (i32, i32) {
    %c0_i32 = arith.constant 0 : i32
    %c0_i32_0 = arith.constant 0 : i32
    %c0_i32_1 = arith.constant 0 : i32
    return %c0_i32, %c0_i32_0 : i32, i32
  }
  func.func @transform_7(%arg0: i32) -> (i32, i32) {
    %c0_i32 = arith.constant 0 : i32
    %c0_i32_0 = arith.constant 0 : i32
    %c0_i32_1 = arith.constant 0 : i32
    return %c0_i32, %c0_i32_0 : i32, i32
  }
  func.func @transform_8(%arg0: i32) -> (i32, i32) {
    %c0_i32 = arith.constant 0 : i32
    %c0_i32_0 = arith.constant 0 : i32
    %c0_i32_1 = arith.constant 0 : i32
    return %c0_i32, %c0_i32_0 : i32, i32
  }
  func.func @transform_9(%arg0: i32) -> (i32, i32) {
    %c0_i32 = arith.constant 0 : i32
    %c0_i32_0 = arith.constant 0 : i32
    %c0_i32_1 = arith.constant 0 : i32
    return %c0_i32, %c0_i32_0 : i32, i32
  }
  func.func @transform_10(%arg0: i32) -> (i32, i32) {
    %c0_i32 = arith.constant 0 : i32
    %c0_i32_0 = arith.constant 0 : i32
    %c0_i32_1 = arith.constant 0 : i32
    return %c0_i32, %c0_i32_0 : i32, i32
  }
  func.func @transform_11(%arg0: i32) -> (i32, i32) {
    %c0_i32 = arith.constant 0 : i32
    %c0_i32_0 = arith.constant 0 : i32
    return %arg0, %c0_i32 : i32, i32
  }
}

</mosaic_0001>

<llo_original>
// kernel: tpu_custom_call.1
$region0: #{tpu_custom_call.1}
  #allocation0 [shape = 'u32[]', space=smem, size = 0x4, offset = 0x4, fixed_abs, tag = 'smem constant byte address 0x4 - core index']
  #allocation1 [shape = 'u32[144,128]{1,0:T(1,128)}', space=vmem, size = 0x12000, scoped, tag = 'internal scratch']
  %s0 = inlined_call_operand.vmem [shape: f32[8,8], index: 0, kind: input, shape index: {}]
  %s1 = inlined_call_operand.vmem [shape: f32[8,256], index: 1, kind: input, shape index: {}]
  %s2 = inlined_call_operand.vmem [shape: f32[1,256], index: 2, kind: input, shape index: {}]
  %s3 = inlined_call_operand.vmem [shape: bf16[256,256], index: 3, kind: input, shape index: {}]
  %s4 = inlined_call_operand.vmem [shape: f32[1,256], index: 4, kind: input, shape index: {}]
  %s5 = inlined_call_operand.hbm [shape: bf16[256,256], index: 5, kind: input, shape index: {}]
  %s6 = inlined_call_operand.vmem [shape: f32[1,256], index: 6, kind: input, shape index: {}]
  %s7 = inlined_call_operand.vmem [shape: f32[256,20], index: 7, kind: input, shape index: {}]
  %s8 = inlined_call_operand.vmem [shape: f32[1,20], index: 8, kind: input, shape index: {}]
  %s9 = inlined_call_operand.vmem [shape: f32[1,20], index: 9, kind: input, shape index: {}]
  %s10 = inlined_call_operand.vmem [shape: f32[1,20], index: 10, kind: input, shape index: {}]
  %s11 = inlined_call_operand.hbm [shape: f32[8,20], index: 11, kind: output, shape index: {}]
  %s12 = sld [smem:[#allocation0]]
  $region58: #{tpu_custom_call.1} parent=0
    _
  %s14 = ssub.s32 1, %s12
  %s15 = scalar_select 0, %s14, %s12
  $region1: #{tpu_custom_call.1} parent=0
    #allocation2 [shape = 'u8[131072]{0}', space=vmem, size = 0x20000, scoped, tag = 'input window, operand 5, single buffered']
    #allocation3 [shape = 's32[1]{0}', space=sflag, size = 0x4, scoped, tag = 'scoped memory for tpu_custom_call.1']
    #allocation4 [shape = 's32[1]{0}', space=sflag, size = 0x4, scoped, tag = 'scoped memory for tpu_custom_call.1']
    #allocation5 [shape = 'u8[4096]{0}', space=vmem, size = 0x1000, scoped, tag = 'output window, operand 0, single buffered']
    %16 = vsyncpa [#allocation3], 0
    %17 = vsyncpa [#allocation4], 0
    // Predicated region
    $region2: #{tpu_custom_call.1} parent=1 // pred_check
      _
    $region3: #{tpu_custom_call.1} parent=1 // pred_check_branch
      %19 = sbr.rel (0) target = $region5
    $region4: #{tpu_custom_call.1} parent=1 // pred_region
      _
    $region5: #{tpu_custom_call.1} parent=1 // pred_fallthru
      _
    // Predicated region
    $region6: #{tpu_custom_call.1} parent=1 // pred_check
      _
    $region7: #{tpu_custom_call.1} parent=1 // pred_check_branch
      %21 = sbr.rel (0) target = $region9
    $region8: #{tpu_custom_call.1} parent=1 // pred_region
      _
    $region9: #{tpu_custom_call.1} parent=1 // pred_fallthru
      _
    // Predicated region
    $region10: #{tpu_custom_call.1} parent=1 // pred_check
      _
    $region11: #{tpu_custom_call.1} parent=1 // pred_check_branch
      %23 = sbr.rel (0) target = $region13
    $region12: #{tpu_custom_call.1} parent=1 // pred_region
      _
    $region13: #{tpu_custom_call.1} parent=1 // pred_fallthru
      _
    // Predicated region
    $region14: #{tpu_custom_call.1} parent=1 // pred_check
      _
    $region15: #{tpu_custom_call.1} parent=1 // pred_check_branch
      %25 = sbr.rel (0) target = $region17
    $region16: #{tpu_custom_call.1} parent=1 // pred_region
      _
    $region17: #{tpu_custom_call.1} parent=1 // pred_fallthru
      _
    // Predicated region
    $region18: #{tpu_custom_call.1} parent=1 // pred_check
      _
    $region19: #{tpu_custom_call.1} parent=1 // pred_check_branch
      %27 = sbr.rel (0) target = $region21
    $region20: #{tpu_custom_call.1} parent=1 // pred_region
      _
    $region21: #{tpu_custom_call.1} parent=1 // pred_fallthru
      _
    // Predicated region
    $region22: #{tpu_custom_call.1} parent=1 // pred_check
      _
    $region23: #{tpu_custom_call.1} parent=1 // pred_check_branch
      %29 = sbr.rel (0) target = $region25
    $region24: #{tpu_custom_call.1} parent=1 // pred_region
      %s31 = ssub.s32 4096, 4096
      %32 = vsyncadd [#allocation3], %s31
      %s33 = sshll.u32 [#allocation2], 4
      %s34 = int_to_ptr.vmem [resolvable:$true] %s33
      %39 = dma.hbm_to_vmem [thread:$0]  %s5, 4096, %s34, [#allocation3], 128, 128, 8
    $region25: #{tpu_custom_call.1} parent=1 // pred_fallthru
      _
    // Predicated region
    $region26: #{tpu_custom_call.1} parent=1 // pred_check
      _
    $region27: #{tpu_custom_call.1} parent=1 // pred_check_branch
      %41 = sbr.rel (0) target = $region29
    $region28: #{tpu_custom_call.1} parent=1 // pred_region
      _
    $region29: #{tpu_custom_call.1} parent=1 // pred_fallthru
      _
    // Predicated region
    $region30: #{tpu_custom_call.1} parent=1 // pred_check
      _
    $region31: #{tpu_custom_call.1} parent=1 // pred_check_branch
      %43 = sbr.rel (0) target = $region33
    $region32: #{tpu_custom_call.1} parent=1 // pred_region
      _
    $region33: #{tpu_custom_call.1} parent=1 // pred_fallthru
      _
    // Predicated region
    $region34: #{tpu_custom_call.1} parent=1 // pred_check
      _
    $region35: #{tpu_custom_call.1} parent=1 // pred_check_branch
      %45 = sbr.rel (0) target = $region37
    $region36: #{tpu_custom_call.1} parent=1 // pred_region
      _
    $region37: #{tpu_custom_call.1} parent=1 // pred_fallthru
      _
    // Predicated region
    $region38: #{tpu_custom_call.1} parent=1 // pred_check
      _
    $region39: #{tpu_custom_call.1} parent=1 // pred_check_branch
      %47 = sbr.rel (0) target = $region41
    $region40: #{tpu_custom_call.1} parent=1 // pred_region
      _
    $region41: #{tpu_custom_call.1} parent=1 // pred_fallthru
      _
    // Predicated region
    $region42: #{tpu_custom_call.1} parent=1 // pred_check
      _
    $region43: #{tpu_custom_call.1} parent=1 // pred_check_branch
      %49 = sbr.rel (0) target = $region45
    $region44: #{tpu_custom_call.1} parent=1 // pred_region
      _
    $region45: #{tpu_custom_call.1} parent=1 // pred_fallthru
      _
    // Predicated region
    $region46: #{tpu_custom_call.1} parent=1 // pred_check
      _
    $region47: #{tpu_custom_call.1} parent=1 // pred_check_branch
      %51 = sbr.rel (0) target = $region49
    $region48: #{tpu_custom_call.1} parent=1 // pred_region
      %52 = dma.done [#allocation3], 4096
    $region49: #{tpu_custom_call.1} parent=1 // pred_fallthru
      _
    %v53 = vld [vmem:[%s0] sm:$0xff]
    %v54 = vld [vmem:[%s1] sm:$0xff]
    %v55 = vld [vmem:[%s1 + $0x8] sm:$0xff]
    %v56 = vld [vmem:[%s2] sm:$0x3]
    %v58 = vlaneseq
    %v59 = vshrl.u32 %v58, 7
    %v60 = vsub.s32 0, %v59
    %v61 = vrot.slane %v56, %v60
    %v62 = vlaneseq
    %v63 = vshrl.u32 %v62, 7
    %v64 = vsub.s32 1, %v63
    %v65 = vrot.slane %v56, %v64
    %vm68 = vcmask 64512
    %v70 = vsel %vm68, %v53, 0
    %72 = vmatprep.subr.mxu0 0.0
    %73 = vmatpush1.msra.mxu0 0.0
    %74 = vmatprep.subr.mxu0 0.0
    %75 = vmatpush1.msra.mxu0 0.0
    %76 = vmatprep.subr.mxu0 0.0
    %77 = vmatpush1.msra.mxu0 0.0
    %78 = vmatprep.subr.mxu0 0.0
    %79 = vmatpush1.msra.mxu0 0.0
    %80 = vmatprep.subr.mxu0 0.0
    %81 = vmatpush1.msra.mxu0 0.0
    %82 = vmatprep.subr.mxu0 0.0
    %83 = vmatpush1.msra.mxu0 0.0
    %84 = vmatprep.subr.mxu0 0.0
    %85 = vmatpush1.msra.mxu0 0.0
    %86 = vmatprep.subr.mxu0 0.0
    %87 = vmatpush1.msra.mxu0 0.0
    %88 = vmatprep.subr.mxu0 0.0
    %89 = vmatpush1.msra.mxu0 0.0
    %90 = vmatprep.subr.mxu0 0.0
    %91 = vmatpush1.msra.mxu0 0.0
    %92 = vmatprep.subr.mxu0 0.0
    %93 = vmatpush1.msra.mxu0 0.0
    %94 = vmatprep.subr.mxu0 0.0
    %95 = vmatpush1.msra.mxu0 0.0
    %96 = vmatprep.subr.mxu0 0.0
    %97 = vmatpush1.msra.mxu0 0.0
    %98 = vmatprep.subr.mxu0 0.0
    %99 = vmatpush1.msra.mxu0 0.0
    %100 = vmatprep.subr.mxu0 0.0
    %101 = vmatpush1.msra.mxu0 0.0
    %102 = vmatprep.subr.mxu0 %v55
    %103 = vmatpush1.msra.mxu0 %v54
    %104 = vmatprep.subr.mxu0 0.0
    %105 = vmatpush2.msra.mxu0 0.0
    %106 = vmatprep.subr.mxu0 0.0
    %107 = vmatpush2.msra.mxu0 0.0
    %108 = vmatprep.subr.mxu0 0.0
    %109 = vmatpush2.msra.mxu0 0.0
    %110 = vmatprep.subr.mxu0 0.0
    %111 = vmatpush2.msra.mxu0 0.0
    %112 = vmatprep.subr.mxu0 0.0
    %113 = vmatpush2.msra.mxu0 0.0
    %114 = vmatprep.subr.mxu0 0.0
    %115 = vmatpush2.msra.mxu0 0.0
    %116 = vmatprep.subr.mxu0 0.0
    %117 = vmatpush2.msra.mxu0 0.0
    %118 = vmatprep.subr.mxu0 0.0
    %119 = vmatpush2.msra.mxu0 0.0
    %120 = vmatprep.subr.mxu0 0.0
    %121 = vmatpush2.msra.mxu0 0.0
    %122 = vmatprep.subr.mxu0 0.0
    %123 = vmatpush2.msra.mxu0 0.0
    %124 = vmatprep.subr.mxu0 0.0
    %125 = vmatpush2.msra.mxu0 0.0
    %126 = vmatprep.subr.mxu0 0.0
    %127 = vmatpush2.msra.mxu0 0.0
    %128 = vmatprep.subr.mxu0 0.0
    %129 = vmatpush2.msra.mxu0 0.0
    %130 = vmatprep.subr.mxu0 0.0
    %131 = vmatpush2.msra.mxu0 0.0
    %132 = vmatprep.subr.mxu0 0.0
    %133 = vmatpush2.msra.mxu0 0.0
    %134 = vmatprep.subr.mxu0 0.0
    %135 = vmatpush2.msra.mxu0 0.0
    %136 = vmatprep.mubr.f32.mxu0 0.0
    %137 = vmatmul.mubr.f32.gmra.mxu0 %v70
    %v138 = vpop.f32.mrf.mxu0
    %v139 = vadd.f32 %v61, %v138
    %v140 = vpop.f32.mrf.mxu0
    %v141 = vadd.f32 %v65, %v140
    %142 = vdwg.mxu0
    %v143 = vmax.f32 %v139, 0.0
    %v144 = vmax.f32 %v141, 0.0
    %v145 = vpack.c.bf16 %v143, %v143
    %v146 = vpack.c.bf16 %v144, %v144
    %v147 = vld [vmem:[%s3] sm:$0xff]
    %v148 = vld [vmem:[%s3 + $0x8] sm:$0xff]
    %v149 = vld [vmem:[%s3 + $0x10] sm:$0xff]
    %v150 = vld [vmem:[%s3 + $0x18] sm:$0xff]
    %v151 = vld [vmem:[%s3 + $0x20] sm:$0xff]
    %v152 = vld [vmem:[%s3 + $0x28] sm:$0xff]
    %v153 = vld [vmem:[%s3 + $0x30] sm:$0xff]
    %v154 = vld [vmem:[%s3 + $0x38] sm:$0xff]
    %v155 = vld [vmem:[%s3 + $0x40] sm:$0xff]
    %v156 = vld [vmem:[%s3 + $0x48] sm:$0xff]
    %v157 = vld [vmem:[%s3 + $0x50] sm:$0xff]
    %v158 = vld [vmem:[%s3 + $0x58] sm:$0xff]
    %v159 = vld [vmem:[%s3 + $0x60] sm:$0xff]
    %v160 = vld [vmem:[%s3 + $0x68] sm:$0xff]
    %v161 = vld [vmem:[%s3 + $0x70] sm:$0xff]
    %v162 = vld [vmem:[%s3 + $0x78] sm:$0xff]
    %v163 = vld [vmem:[%s3 + $0x80] sm:$0xff]
    %v164 = vld [vmem:[%s3 + $0x88] sm:$0xff]
    %v165 = vld [vmem:[%s3 + $0x90] sm:$0xff]
    %v166 = vld [vmem:[%s3 + $0x98] sm:$0xff]
    %v167 = vld [vmem:[%s3 + $0xa0] sm:$0xff]
    %v168 = vld [vmem:[%s3 + $0xa8] sm:$0xff]
    %v169 = vld [vmem:[%s3 + $0xb0] sm:$0xff]
    %v170 = vld [vmem:[%s3 + $0xb8] sm:$0xff]
    %v171 = vld [vmem:[%s3 + $0xc0] sm:$0xff]
    %v172 = vld [vmem:[%s3 + $0xc8] sm:$0xff]
    %v173 = vld [vmem:[%s3 + $0xd0] sm:$0xff]
    %v174 = vld [vmem:[%s3 + $0xd8] sm:$0xff]
    %v175 = vld [vmem:[%s3 + $0xe0] sm:$0xff]
    %v176 = vld [vmem:[%s3 + $0xe8] sm:$0xff]
    %v177 = vld [vmem:[%s3 + $0xf0] sm:$0xff]
    %v178 = vld [vmem:[%s3 + $0xf8] sm:$0xff]
    %v179 = vld [vmem:[%s4] sm:$0x3]
    %v181 = vlaneseq
    %v182 = vshrl.u32 %v181, 7
    %v183 = vsub.s32 0, %v182
    %v184 = vrot.slane %v179, %v183
    %v185 = vlaneseq
    %v186 = vshrl.u32 %v185, 7
    %v187 = vsub.s32 1, %v186
    %v188 = vrot.slane %v179, %v187
    %v223 = vunpack.c.l.b16 %v147
    %v224 = vunpack.c.h.b16 %v147
    %v225 = vunpack.c.l.b16 %v148
    %v226 = vunpack.c.h.b16 %v148
    %v227 = vunpack.c.l.b16 %v149
    %v228 = vunpack.c.h.b16 %v149
    %v229 = vunpack.c.l.b16 %v150
    %v230 = vunpack.c.h.b16 %v150
    %v231 = vunpack.c.l.b16 %v151
    %v232 = vunpack.c.h.b16 %v151
    %v233 = vunpack.c.l.b16 %v152
    %v234 = vunpack.c.h.b16 %v152
    %v235 = vunpack.c.l.b16 %v153
    %v236 = vunpack.c.h.b16 %v153
    %v237 = vunpack.c.l.b16 %v154
    %v238 = vunpack.c.h.b16 %v154
    %v239 = vunpack.c.l.b16 %v155
    %v240 = vunpack.c.h.b16 %v155
    %v241 = vunpack.c.l.b16 %v156
    %v242 = vunpack.c.h.b16 %v156
    %v243 = vunpack.c.l.b16 %v157
    %v244 = vunpack.c.h.b16 %v157
    %v245 = vunpack.c.l.b16 %v158
    %v246 = vunpack.c.h.b16 %v158
    %v247 = vunpack.c.l.b16 %v159
    %v248 = vunpack.c.h.b16 %v159
    %v249 = vunpack.c.l.b16 %v160
    %v250 = vunpack.c.h.b16 %v160
    %v251 = vunpack.c.l.b16 %v161
    %v252 = vunpack.c.h.b16 %v161
    %v253 = vunpack.c.l.b16 %v162
    %v254 = vunpack.c.h.b16 %v162
    %v255 = vunpack.c.l.b16 %v163
    %v256 = vunpack.c.h.b16 %v163
    %v257 = vunpack.c.l.b16 %v164
    %v258 = vunpack.c.h.b16 %v164
    %v259 = vunpack.c.l.b16 %v165
    %v260 = vunpack.c.h.b16 %v165
    %v261 = vunpack.c.l.b16 %v166
    %v262 = vunpack.c.h.b16 %v166
    %v263 = vunpack.c.l.b16 %v167
    %v264 = vunpack.c.h.b16 %v167
    %v265 = vunpack.c.l.b16 %v168
    %v266 = vunpack.c.h.b16 %v168
    %v267 = vunpack.c.l.b16 %v169
    %v268 = vunpack.c.h.b16 %v169
    %v269 = vunpack.c.l.b16 %v170
    %v270 = vunpack.c.h.b16 %v170
    %v271 = vunpack.c.l.b16 %v171
    %v272 = vunpack.c.h.b16 %v171
    %v273 = vunpack.c.l.b16 %v172
    %v274 = vunpack.c.h.b16 %v172
    %v275 = vunpack.c.l.b16 %v173
    %v276 = vunpack.c.h.b16 %v173
    %v277 = vunpack.c.l.b16 %v174
    %v278 = vunpack.c.h.b16 %v174
    %v279 = vunpack.c.l.b16 %v175
    %v280 = vunpack.c.h.b16 %v175
    %v281 = vunpack.c.l.b16 %v176
    %v282 = vunpack.c.h.b16 %v176
    %v283 = vunpack.c.l.b16 %v177
    %v284 = vunpack.c.h.b16 %v177
    %v285 = vunpack.c.l.b16 %v178
    %v286 = vunpack.c.h.b16 %v178
    %v287 = vpack.c.b16 %v225, %v223
    %v288 = vpack.c.b16 %v226, %v224
    %v289 = vpack.c.b16 %v229, %v227
    %v290 = vpack.c.b16 %v230, %v228
    %v291 = vpack.c.b16 %v233, %v231
    %v292 = vpack.c.b16 %v234, %v232
    %v293 = vpack.c.b16 %v237, %v235
    %v294 = vpack.c.b16 %v238, %v236
    %v295 = vpack.c.b16 %v241, %v239
    %v296 = vpack.c.b16 %v242, %v240
    %v297 = vpack.c.b16 %v245, %v243
    %v298 = vpack.c.b16 %v246, %v244
    %v299 = vpack.c.b16 %v249, %v247
    %v300 = vpack.c.b16 %v250, %v248
    %v301 = vpack.c.b16 %v253, %v251
    %v302 = vpack.c.b16 %v254, %v252
    %v303 = vpack.c.b16 %v257, %v255
    %v304 = vpack.c.b16 %v258, %v256
    %v305 = vpack.c.b16 %v261, %v259
    %v306 = vpack.c.b16 %v262, %v260
    %v307 = vpack.c.b16 %v265, %v263
    %v308 = vpack.c.b16 %v266, %v264
    %v309 = vpack.c.b16 %v269, %v267
    %v310 = vpack.c.b16 %v270, %v268
    %v311 = vpack.c.b16 %v273, %v271
    %v312 = vpack.c.b16 %v274, %v272
    %v313 = vpack.c.b16 %v277, %v275
    %v314 = vpack.c.b16 %v278, %v276
    %v315 = vpack.c.b16 %v281, %v279
    %v316 = vpack.c.b16 %v282, %v280
    %v317 = vpack.c.b16 %v285, %v283
    %v318 = vpack.c.b16 %v286, %v284
    %351 = vmatprep.subr.bf16.mxu0 %v302
    %352 = vmatpush1.bf16.msra.mxu0 %v301
    %353 = vmatprep.subr.bf16.mxu0 %v300
    %354 = vmatpush1.bf16.msra.mxu0 %v299
    %355 = vmatprep.subr.bf16.mxu0 %v298
    %356 = vmatpush1.bf16.msra.mxu0 %v297
    %357 = vmatprep.subr.bf16.mxu0 %v296
    %358 = vmatpush1.bf16.msra.mxu0 %v295
    %359 = vmatprep.subr.bf16.mxu0 %v294
    %360 = vmatpush1.bf16.msra.mxu0 %v293
    %361 = vmatprep.subr.bf16.mxu0 %v292
    %362 = vmatpush1.bf16.msra.mxu0 %v291
    %363 = vmatprep.subr.bf16.mxu0 %v290
    %364 = vmatpush1.bf16.msra.mxu0 %v289
    %365 = vmatprep.subr.bf16.mxu0 %v288
    %366 = vmatpush1.bf16.msra.mxu0 %v287
    %367 = vmatprep.subr.bf16.mxu0 %v318
    %368 = vmatpush2.bf16.msra.mxu0 %v317
    %369 = vmatprep.subr.bf16.mxu0 %v316
    %370 = vmatpush2.bf16.msra.mxu0 %v315
    %371 = vmatprep.subr.bf16.mxu0 %v314
    %372 = vmatpush2.bf16.msra.mxu0 %v313
    %373 = vmatprep.subr.bf16.mxu0 %v312
    %374 = vmatpush2.bf16.msra.mxu0 %v311
    %375 = vmatprep.subr.bf16.mxu0 %v310
    %376 = vmatpush2.bf16.msra.mxu0 %v309
    %377 = vmatprep.subr.bf16.mxu0 %v308
    %378 = vmatpush2.bf16.msra.mxu0 %v307
    %379 = vmatprep.subr.bf16.mxu0 %v306
    %380 = vmatpush2.bf16.msra.mxu0 %v305
    %381 = vmatprep.subr.bf16.mxu0 %v304
    %382 = vmatpush2.bf16.msra.mxu0 %v303
    %383 = vmatprep.mubr.bf16.mxu0 %v146
    %384 = vmatmul.mubr.bf16.gmra.mxu0 %v145
    %v385 = vpop.f32.mrf.mxu0
    %v386 = vadd.f32 %v184, %v385
    %v387 = vpop.f32.mrf.mxu0
    %v388 = vadd.f32 %v188, %v387
    %v389 = vpop.f32.mrf.mxu0
    %v390 = vpop.f32.mrf.mxu0
    %391 = vdwg.mxu0
    %v392 = vmax.f32 %v386, 0.0
    %v393 = vmax.f32 %v388, 0.0
    %v394 = vpack.c.bf16 %v392, %v392
    %v395 = vpack.c.bf16 %v393, %v393
    %v396 = vld [vmem:[#allocation2] sm:$0xff]
    %v397 = vld [vmem:[#allocation2 + $0x8] sm:$0xff]
    %v398 = vld [vmem:[#allocation2 + $0x10] sm:$0xff]
    %v399 = vld [vmem:[#allocation2 + $0x18] sm:$0xff]
    %v400 = vld [vmem:[#allocation2 + $0x20] sm:$0xff]
    %v401 = vld [vmem:[#allocation2 + $0x28] sm:$0xff]
    %v402 = vld [vmem:[#allocation2 + $0x30] sm:$0xff]
    %v403 = vld [vmem:[#allocation2 + $0x38] sm:$0xff]
    %v404 = vld [vmem:[#allocation2 + $0x40] sm:$0xff]
    %v405 = vld [vmem:[#allocation2 + $0x48] sm:$0xff]
    %v406 = vld [vmem:[#allocation2 + $0x50] sm:$0xff]
    %v407 = vld [vmem:[#allocation2 + $0x58] sm:$0xff]
    %v408 = vld [vmem:[#allocation2 + $0x60] sm:$0xff]
    %v409 = vld [vmem:[#allocation2 + $0x68] sm:$0xff]
    %v410 = vld [vmem:[#allocation2 + $0x70] sm:$0xff]
    %v411 = vld [vmem:[#allocation2 + $0x78] sm:$0xff]
    %v412 = vld [vmem:[#allocation2 + $0x80] sm:$0xff]
    %v413 = vld [vmem:[#allocation2 + $0x88] sm:$0xff]
    %v414 = vld [vmem:[#allocation2 + $0x90] sm:$0xff]
    %v415 = vld [vmem:[#allocation2 + $0x98] sm:$0xff]
    %v416 = vld [vmem:[#allocation2 + $0xa0] sm:$0xff]
    %v417 = vld [vmem:[#allocation2 + $0xa8] sm:$0xff]
    %v418 = vld [vmem:[#allocation2 + $0xb0] sm:$0xff]
    %v419 = vld [vmem:[#allocation2 + $0xb8] sm:$0xff]
    %v420 = vld [vmem:[#allocation2 + $0xc0] sm:$0xff]
    %v421 = vld [vmem:[#allocation2 + $0xc8] sm:$0xff]
    %v422 = vld [vmem:[#allocation2 + $0xd0] sm:$0xff]
    %v423 = vld [vmem:[#allocation2 + $0xd8] sm:$0xff]
    %v424 = vld [vmem:[#allocation2 + $0xe0] sm:$0xff]
    %v425 = vld [vmem:[#allocation2 + $0xe8] sm:$0xff]
    %v426 = vld [vmem:[#allocation2 + $0xf0] sm:$0xff]
    %v427 = vld [vmem:[#allocation2 + $0xf8] sm:$0xff]
    %v428 = vld [vmem:[%s6] sm:$0x3]
    %v430 = vlaneseq
    %v431 = vshrl.u32 %v430, 7
    %v432 = vsub.s32 0, %v431
    %v433 = vrot.slane %v428, %v432
    %v434 = vlaneseq
    %v435 = vshrl.u32 %v434, 7
    %v436 = vsub.s32 1, %v435
    %v437 = vrot.slane %v428, %v436
    %v472 = vunpack.c.l.b16 %v396
    %v473 = vunpack.c.h.b16 %v396
    %v474 = vunpack.c.l.b16 %v397
    %v475 = vunpack.c.h.b16 %v397
    %v476 = vunpack.c.l.b16 %v398
    %v477 = vunpack.c.h.b16 %v398
    %v478 = vunpack.c.l.b16 %v399
    %v479 = vunpack.c.h.b16 %v399
    %v480 = vunpack.c.l.b16 %v400
    %v481 = vunpack.c.h.b16 %v400
    %v482 = vunpack.c.l.b16 %v401
    %v483 = vunpack.c.h.b16 %v401
    %v484 = vunpack.c.l.b16 %v402
    %v485 = vunpack.c.h.b16 %v402
    %v486 = vunpack.c.l.b16 %v403
    %v487 = vunpack.c.h.b16 %v403
    %v488 = vunpack.c.l.b16 %v404
    %v489 = vunpack.c.h.b16 %v404
    %v490 = vunpack.c.l.b16 %v405
    %v491 = vunpack.c.h.b16 %v405
    %v492 = vunpack.c.l.b16 %v406
    %v493 = vunpack.c.h.b16 %v406
    %v494 = vunpack.c.l.b16 %v407
    %v495 = vunpack.c.h.b16 %v407
    %v496 = vunpack.c.l.b16 %v408
    %v497 = vunpack.c.h.b16 %v408
    %v498 = vunpack.c.l.b16 %v409
    %v499 = vunpack.c.h.b16 %v409
    %v500 = vunpack.c.l.b16 %v410
    %v501 = vunpack.c.h.b16 %v410
    %v502 = vunpack.c.l.b16 %v411
    %v503 = vunpack.c.h.b16 %v411
    %v504 = vunpack.c.l.b16 %v412
    %v505 = vunpack.c.h.b16 %v412
    %v506 = vunpack.c.l.b16 %v413
    %v507 = vunpack.c.h.b16 %v413
    %v508 = vunpack.c.l.b16 %v414
    %v509 = vunpack.c.h.b16 %v414
    %v510 = vunpack.c.l.b16 %v415
    %v511 = vunpack.c.h.b16 %v415
    %v512 = vunpack.c.l.b16 %v416
    %v513 = vunpack.c.h.b16 %v416
    %v514 = vunpack.c.l.b16 %v417
    %v515 = vunpack.c.h.b16 %v417
    %v516 = vunpack.c.l.b16 %v418
    %v517 = vunpack.c.h.b16 %v418
    %v518 = vunpack.c.l.b16 %v419
    %v519 = vunpack.c.h.b16 %v419
    %v520 = vunpack.c.l.b16 %v420
    %v521 = vunpack.c.h.b16 %v420
    %v522 = vunpack.c.l.b16 %v421
    %v523 = vunpack.c.h.b16 %v421
    %v524 = vunpack.c.l.b16 %v422
    %v525 = vunpack.c.h.b16 %v422
    %v526 = vunpack.c.l.b16 %v423
    %v527 = vunpack.c.h.b16 %v423
    %v528 = vunpack.c.l.b16 %v424
    %v529 = vunpack.c.h.b16 %v424
    %v530 = vunpack.c.l.b16 %v425
    %v531 = vunpack.c.h.b16 %v425
    %v532 = vunpack.c.l.b16 %v426
    %v533 = vunpack.c.h.b16 %v426
    %v534 = vunpack.c.l.b16 %v427
    %v535 = vunpack.c.h.b16 %v427
    %v536 = vpack.c.b16 %v474, %v472
    %v537 = vpack.c.b16 %v475, %v473
    %v538 = vpack.c.b16 %v478, %v476
    %v539 = vpack.c.b16 %v479, %v477
    %v540 = vpack.c.b16 %v482, %v480
    %v541 = vpack.c.b16 %v483, %v481
    %v542 = vpack.c.b16 %v486, %v484
    %v543 = vpack.c.b16 %v487, %v485
    %v544 = vpack.c.b16 %v490, %v488
    %v545 = vpack.c.b16 %v491, %v489
    %v546 = vpack.c.b16 %v494, %v492
    %v547 = vpack.c.b16 %v495, %v493
    %v548 = vpack.c.b16 %v498, %v496
    %v549 = vpack.c.b16 %v499, %v497
    %v550 = vpack.c.b16 %v502, %v500
    %v551 = vpack.c.b16 %v503, %v501
    %v552 = vpack.c.b16 %v506, %v504
    %v553 = vpack.c.b16 %v507, %v505
    %v554 = vpack.c.b16 %v510, %v508
    %v555 = vpack.c.b16 %v511, %v509
    %v556 = vpack.c.b16 %v514, %v512
    %v557 = vpack.c.b16 %v515, %v513
    %v558 = vpack.c.b16 %v518, %v516
    %v559 = vpack.c.b16 %v519, %v517
    %v560 = vpack.c.b16 %v522, %v520
    %v561 = vpack.c.b16 %v523, %v521
    %v562 = vpack.c.b16 %v526, %v524
    %v563 = vpack.c.b16 %v527, %v525
    %v564 = vpack.c.b16 %v530, %v528
    %v565 = vpack.c.b16 %v531, %v529
    %v566 = vpack.c.b16 %v534, %v532
    %v567 = vpack.c.b16 %v535, %v533
    %600 = vmatprep.subr.bf16.mxu0 %v551
    %601 = vmatpush1.bf16.msra.mxu0 %v550
    %602 = vmatprep.subr.bf16.mxu0 %v549
    %603 = vmatpush1.bf16.msra.mxu0 %v548
    %604 = vmatprep.subr.bf16.mxu0 %v547
    %605 = vmatpush1.bf16.msra.mxu0 %v546
    %606 = vmatprep.subr.bf16.mxu0 %v545
    %607 = vmatpush1.bf16.msra.mxu0 %v544
    %608 = vmatprep.subr.bf16.mxu0 %v543
    %609 = vmatpush1.bf16.msra.mxu0 %v542
    %610 = vmatprep.subr.bf16.mxu0 %v541
    %611 = vmatpush1.bf16.msra.mxu0 %v540
    %612 = vmatprep.subr.bf16.mxu0 %v539
    %613 = vmatpush1.bf16.msra.mxu0 %v538
    %614 = vmatprep.subr.bf16.mxu0 %v537
    %615 = vmatpush1.bf16.msra.mxu0 %v536
    %616 = vmatprep.subr.bf16.mxu0 %v567
    %617 = vmatpush2.bf16.msra.mxu0 %v566
    %618 = vmatprep.subr.bf16.mxu0 %v565
    %619 = vmatpush2.bf16.msra.mxu0 %v564
    %620 = vmatprep.subr.bf16.mxu0 %v563
    %621 = vmatpush2.bf16.msra.mxu0 %v562
    %622 = vmatprep.subr.bf16.mxu0 %v561
    %623 = vmatpush2.bf16.msra.mxu0 %v560
    %624 = vmatprep.subr.bf16.mxu0 %v559
    %625 = vmatpush2.bf16.msra.mxu0 %v558
    %626 = vmatprep.subr.bf16.mxu0 %v557
    %627 = vmatpush2.bf16.msra.mxu0 %v556
    %628 = vmatprep.subr.bf16.mxu0 %v555
    %629 = vmatpush2.bf16.msra.mxu0 %v554
    %630 = vmatprep.subr.bf16.mxu0 %v553
    %631 = vmatpush2.bf16.msra.mxu0 %v552
    %632 = vmatprep.mubr.bf16.mxu0 %v395
    %633 = vmatmul.mubr.bf16.gmra.mxu0 %v394
    %v634 = vpop.f32.mrf.mxu0
    %v635 = vadd.f32 %v433, %v634
    %v636 = vpop.f32.mrf.mxu0
    %v637 = vadd.f32 %v437, %v636
    %v638 = vpop.f32.mrf.mxu0
    %v639 = vpop.f32.mrf.mxu0
    %640 = vdwg.mxu0
    %v641 = vmax.f32 %v635, 0.0
    %v642 = vmax.f32 %v637, 0.0
    %v643 = vld [vmem:[%s7] sm:$0xff]
    %v644 = vld [vmem:[%s7 + $0x8] sm:$0xff]
    %v645 = vld [vmem:[%s7 + $0x10] sm:$0xff]
    %v646 = vld [vmem:[%s7 + $0x18] sm:$0xff]
    %v647 = vld [vmem:[%s7 + $0x20] sm:$0xff]
    %v648 = vld [vmem:[%s7 + $0x28] sm:$0xff]
    %v649 = vld [vmem:[%s7 + $0x30] sm:$0xff]
    %v650 = vld [vmem:[%s7 + $0x38] sm:$0xff]
    %v651 = vld [vmem:[%s7 + $0x40] sm:$0xff]
    %v652 = vld [vmem:[%s7 + $0x48] sm:$0xff]
    %v653 = vld [vmem:[%s7 + $0x50] sm:$0xff]
    %v654 = vld [vmem:[%s7 + $0x58] sm:$0xff]
    %v655 = vld [vmem:[%s7 + $0x60] sm:$0xff]
    %v656 = vld [vmem:[%s7 + $0x68] sm:$0xff]
    %v657 = vld [vmem:[%s7 + $0x70] sm:$0xff]
    %v658 = vld [vmem:[%s7 + $0x78] sm:$0xff]
    %v659 = vld [vmem:[%s7 + $0x80] sm:$0xff]
    %v660 = vld [vmem:[%s7 + $0x88] sm:$0xff]
    %v661 = vld [vmem:[%s7 + $0x90] sm:$0xff]
    %v662 = vld [vmem:[%s7 + $0x98] sm:$0xff]
    %v663 = vld [vmem:[%s7 + $0xa0] sm:$0xff]
    %v664 = vld [vmem:[%s7 + $0xa8] sm:$0xff]
    %v665 = vld [vmem:[%s7 + $0xb0] sm:$0xff]
    %v666 = vld [vmem:[%s7 + $0xb8] sm:$0xff]
    %v667 = vld [vmem:[%s7 + $0xc0] sm:$0xff]
    %v668 = vld [vmem:[%s7 + $0xc8] sm:$0xff]
    %v669 = vld [vmem:[%s7 + $0xd0] sm:$0xff]
    %v670 = vld [vmem:[%s7 + $0xd8] sm:$0xff]
    %v671 = vld [vmem:[%s7 + $0xe0] sm:$0xff]
    %v672 = vld [vmem:[%s7 + $0xe8] sm:$0xff]
    %v673 = vld [vmem:[%s7 + $0xf0] sm:$0xff]
    %v674 = vld [vmem:[%s7 + $0xf8] sm:$0xff]
    %v675 = vld [vmem:[%s8] sm:$0x1]
    %v677 = vlaneseq
    %v678 = vshrl.u32 %v677, 7
    %v679 = vsub.s32 0, %v678
    %v680 = vrot.slane %v675, %v679
    %682 = vmatprep.subr.mxu0 0.0
    %683 = vmatpush1.msra.mxu0 %v658
    %684 = vmatprep.subr.mxu0 0.0
    %685 = vmatpush1.msra.mxu0 %v657
    %686 = vmatprep.subr.mxu0 0.0
    %687 = vmatpush1.msra.mxu0 %v656
    %688 = vmatprep.subr.mxu0 0.0
    %689 = vmatpush1.msra.mxu0 %v655
    %690 = vmatprep.subr.mxu0 0.0
    %691 = vmatpush1.msra.mxu0 %v654
    %692 = vmatprep.subr.mxu0 0.0
    %693 = vmatpush1.msra.mxu0 %v653
    %694 = vmatprep.subr.mxu0 0.0
    %695 = vmatpush1.msra.mxu0 %v652
    %696 = vmatprep.subr.mxu0 0.0
    %697 = vmatpush1.msra.mxu0 %v651
    %698 = vmatprep.subr.mxu0 0.0
    %699 = vmatpush1.msra.mxu0 %v650
    %700 = vmatprep.subr.mxu0 0.0
    %701 = vmatpush1.msra.mxu0 %v649
    %702 = vmatprep.subr.mxu0 0.0
    %703 = vmatpush1.msra.mxu0 %v648
    %704 = vmatprep.subr.mxu0 0.0
    %705 = vmatpush1.msra.mxu0 %v647
    %706 = vmatprep.subr.mxu0 0.0
    %707 = vmatpush1.msra.mxu0 %v646
    %708 = vmatprep.subr.mxu0 0.0
    %709 = vmatpush1.msra.mxu0 %v645
    %710 = vmatprep.subr.mxu0 0.0
    %711 = vmatpush1.msra.mxu0 %v644
    %712 = vmatprep.subr.mxu0 0.0
    %713 = vmatpush1.msra.mxu0 %v643
    %714 = vmatprep.subr.mxu0 0.0
    %715 = vmatpush2.msra.mxu0 %v674
    %716 = vmatprep.subr.mxu0 0.0
    %717 = vmatpush2.msra.mxu0 %v673
    %718 = vmatprep.subr.mxu0 0.0
    %719 = vmatpush2.msra.mxu0 %v672
    %720 = vmatprep.subr.mxu0 0.0
    %721 = vmatpush2.msra.mxu0 %v671
    %722 = vmatprep.subr.mxu0 0.0
    %723 = vmatpush2.msra.mxu0 %v670
    %724 = vmatprep.subr.mxu0 0.0
    %725 = vmatpush2.msra.mxu0 %v669
    %726 = vmatprep.subr.mxu0 0.0
    %727 = vmatpush2.msra.mxu0 %v668
    %728 = vmatprep.subr.mxu0 0.0
    %729 = vmatpush2.msra.mxu0 %v667
    %730 = vmatprep.subr.mxu0 0.0
    %731 = vmatpush2.msra.mxu0 %v666
    %732 = vmatprep.subr.mxu0 0.0
    %733 = vmatpush2.msra.mxu0 %v665
    %734 = vmatprep.subr.mxu0 0.0
    %735 = vmatpush2.msra.mxu0 %v664
    %736 = vmatprep.subr.mxu0 0.0
    %737 = vmatpush2.msra.mxu0 %v663
    %738 = vmatprep.subr.mxu0 0.0
    %739 = vmatpush2.msra.mxu0 %v662
    %740 = vmatprep.subr.mxu0 0.0
    %741 = vmatpush2.msra.mxu0 %v661
    %742 = vmatprep.subr.mxu0 0.0
    %743 = vmatpush2.msra.mxu0 %v660
    %744 = vmatprep.subr.mxu0 0.0
    %745 = vmatpush2.msra.mxu0 %v659
    %746 = vmatprep.mubr.f32.mxu0 %v642
    %747 = vmatmul.mubr.f32.gmra.mxu0 %v641
    %v748 = vpop.f32.mrf.mxu0
    %v749 = vadd.f32 %v680, %v748
    %v750 = vpop.f32.mrf.mxu0
    %751 = vdwg.mxu0
    %v752 = vld [vmem:[%s9] sm:$0x1]
    %v753 = vld [vmem:[%s10] sm:$0x1]
    %v755 = vlaneseq
    %v756 = vshrl.u32 %v755, 7
    %v757 = vsub.s32 0, %v756
    %v758 = vrot.slane %v752, %v757
    %v760 = vmax.f32 %v758, %v749
    %v762 = vlaneseq
    %v763 = vshrl.u32 %v762, 7
    %v764 = vsub.s32 0, %v763
    %v765 = vrot.slane %v753, %v764
    %v767 = vmin.f32 %v765, %v760
    %vm768 = vcmask 162816
    %769 = vst.msk [vmem:[#allocation5] sm:$0xff] %vm768, %v767
    // Predicated region
    $region50: #{tpu_custom_call.1} parent=1 // pred_check
      _
    $region51: #{tpu_custom_call.1} parent=1 // pred_check_branch
      %771 = sbr.rel (0) target = $region53
    $region52: #{tpu_custom_call.1} parent=1 // pred_region
      %s773 = ssub.s32 128, 128
      %774 = vsyncadd [#allocation4], %s773
      %s776 = sshll.u32 [#allocation5], 4
      %s777 = int_to_ptr.vmem [resolvable:$true] %s776
      %779 = dma.vmem_to_hbm [thread:$0]  %s777, 128, %s11, [#allocation4]
    $region53: #{tpu_custom_call.1} parent=1 // pred_fallthru
      _
    // Predicated region
    $region54: #{tpu_custom_call.1} parent=1 // pred_check
      _
    $region55: #{tpu_custom_call.1} parent=1 // pred_check_branch
      %781 = sbr.rel (0) target = $region57
    $region56: #{tpu_custom_call.1} parent=1 // pred_region
      %782 = dma.done [#allocation4], 128
    $region57: #{tpu_custom_call.1} parent=1 // pred_fallthru
      _
    %783 = vsyncpa [#allocation3], 1
    %784 = vsyncpa [#allocation4], 1

</llo_original>
